<compile_context>
chip_gen: v6e
topology: v6e:2x2x1
jax: 0.10.0
libtpu: 0.0.40
codegen_flags: <defaults>
</compile_context>

<pallas_src>
import functools
import math

import jax
import jax.numpy as jnp
from jax.experimental import pallas as pl
from jax.experimental.pallas import tpu as pltpu

_LANE = 1024                           # preferred slab width (multiple of 128)
_TARGET_BLOCK_BYTES = 4 * 1024 * 1024  # ~4 MiB per block -> 16 MiB pipelined footprint
_VMEM_LIMIT_BYTES = 48 * 1024 * 1024   # explicit scoped-VMEM limit (safe on v5e/v6e/v7x)
_MIN_SPLIT_TILES = 8                   # aim for >=8 tiles on small inputs


def _make_hard_cutoff_kernel(cutoff: float):
    def kernel(d_ref, o_ref):
        d = d_ref[...]
        # Compare in f32 (matches the module's f32 cutoff buffer); multiplying
        # by the cast mask keeps reference NaN/Inf behaviour (NaN * 0 = NaN).
        mask = (d.astype(jnp.float32) <= jnp.float32(cutoff)).astype(d.dtype)
        o_ref[...] = d * mask
    return kernel


def _round_up(x: int, m: int) -> int:
    return ((x + m - 1) // m) * m


def _run_slab(slab: jax.Array, cutoff: float, *, alias_input: bool) -> jax.Array:
    rows, width = slab.shape
    itemsize = jnp.dtype(slab.dtype).itemsize
    row_align = 8 * max(1, 4 // itemsize)          # 8 (f32) / 16 (bf16) / 32 (int8)

    max_tile_rows = max(
        row_align,
        (_TARGET_BLOCK_BYTES // (width * itemsize)) // row_align * row_align,
    )

    if rows <= max_tile_rows:
        if rows >= _MIN_SPLIT_TILES * row_align:
            # Split small/mid inputs so both v7x TCs get work + DMA overlap.
            tile_rows = _round_up(pl.cdiv(rows, _MIN_SPLIT_TILES), row_align)
        elif rows >= 2 * row_align:
            tile_rows = _round_up(pl.cdiv(rows, 2), row_align)
        else:
            tile_rows = rows                        # full-dim block (always legal)
    else:
        tile_rows = max_tile_rows

    grid = (pl.cdiv(rows, tile_rows),)              # ragged last block is masked by Pallas

    kwargs = {}
    if alias_input:
        kwargs["input_output_aliases"] = {0: 0}     # slab is a fresh temporary

    return pl.pallas_call(
        _make_hard_cutoff_kernel(float(cutoff)),
        out_shape=jax.ShapeDtypeStruct((rows, width), slab.dtype),
        grid=grid,
        in_specs=[pl.BlockSpec((tile_rows, width), lambda i: (i, 0))],
        out_specs=pl.BlockSpec((tile_rows, width), lambda i: (i, 0)),
        compiler_params=pltpu.CompilerParams(
            dimension_semantics=("parallel",),
            vmem_limit_bytes=_VMEM_LIMIT_BYTES,
        ),
        **kwargs,
    )(slab)


@functools.partial(jax.jit, static_argnames=("cutoff",))
def hard_cutoff(distances: jax.Array, cutoff: float = 5.0) -> jax.Array:
    """Hard cutoff: zero out all values beyond `cutoff` (elementwise)."""
    orig_shape = distances.shape
    total = math.prod(orig_shape) if orig_shape else 1

    if total == 0:
        return distances

    # Path A (no pad, no slice): reshape into a lane-dense slab whose width is
    # a multiple of 128; the grid handles ragged rows on the final block.
    width = None
    for w in (_LANE, 512, 256, 128):
        if total % w == 0:
            width = w
            break

    if width is not None:
        slab = distances.reshape(total // width, width)
        out = _run_slab(slab, cutoff, alias_input=False)
        return out.reshape(orig_shape)

    # Path B (fallback, element count not 128-aligned): pad the flat array to
    # one _LANE multiple, run, slice back. Single extra copy each way.
    flat = distances.reshape(-1)
    padded_total = _round_up(total, _LANE)
    flat = jnp.pad(flat, (0, padded_total - total))
    slab = flat.reshape(padded_total // _LANE, _LANE)
    out_slab = _run_slab(slab, cutoff, alias_input=True)
    return out_slab.reshape(-1)[:total].reshape(orig_shape)


class HardCutoff:
    """JAX/Pallas wrapper mirroring the PyTorch HardCutoff module."""

    def __init__(self, cutoff: float = 5.0):
        # Static Python float (the PyTorch buffer is a constant); avoids a
        # device->host sync per call and keeps the cutoff compile-time.
        self.cutoff = float(cutoff)

    def __call__(self, distances: jax.Array) -> jax.Array:
        return hard_cutoff(distances, cutoff=self.cutoff)


if __name__ == "__main__":
    key = jax.random.PRNGKey(0)
    module = HardCutoff(cutoff=5.0)

    def ref_fn(d, c=5.0):
        return d * (d <= c).astype(d.dtype)

    k1, k2, k3 = jax.random.split(key, 3)

    # Small shape consistent with the module docs: Nbatch=2, Nat=8, Nneigh=16.
    distances = jax.random.uniform(
        k1, (2, 8, 16), dtype=jnp.float32, minval=0.0, maxval=10.0
    )
    out = jax.block_until_ready(module(distances))
    assert out.shape == distances.shape and out.dtype == distances.dtype
    assert jnp.allclose(out, ref_fn(distances)), "mismatch (small aligned case)"

    # Unaligned element count -> exercises the padded fallback path.
    distances_u = jax.random.uniform(
        k2, (3, 5, 7), dtype=jnp.float32, minval=0.0, maxval=10.0
    )
    out_u = jax.block_until_ready(module(distances_u))
    assert out_u.shape == distances_u.shape
    assert jnp.allclose(out_u, ref_fn(distances_u)), "mismatch (unaligned case)"

    # Medium case -> exercises the multi-tile grid (ragged-free, width 1024).
    distances_m = jax.random.uniform(
        k3, (4, 512, 512), dtype=jnp.float32, minval=0.0, maxval=10.0
    )
    out_m = jax.block_until_ready(module(distances_m))
    assert jnp.allclose(out_m, ref_fn(distances_m)), "mismatch (tiled case)"

    # bf16 dtype check.
    distances_b = distances.astype(jnp.bfloat16)
    out_b = jax.block_until_ready(module(distances_b))
    assert out_b.dtype == jnp.bfloat16
    assert jnp.allclose(
        out_b.astype(jnp.float32), ref_fn(distances_b).astype(jnp.float32)
    ), "mismatch (bf16 case)"

    print("KERNEL_OK")
</pallas_src>

<mosaic_0001>
module attributes {stable_mosaic.version = 11 : i64} {
  func.func @kernel(%arg0: i32, %arg1: memref<1x256xf32, #tpu.memory_space<vmem>>, %arg2: memref<1x256xf32, #tpu.memory_space<vmem>>) attributes {dimension_semantics = [#tpu.dimension_semantics<parallel>], iteration_bounds = array<i64: 1>, scalar_prefetch = 0 : i64, scratch_operands = 0 : i64, tpu.core_type = #tpu.core_type<tc>, window_params = [{transform_indices = @transform_0, window_bounds = array<i64: 1, 256>}, {transform_indices = @transform_1, window_bounds = array<i64: 1, 256>}]} {
    %c0 = arith.constant 0 : index
    %c0_0 = arith.constant 0 : index
    %0 = vector.load %arg1[%c0, %c0_0] : memref<1x256xf32, #tpu.memory_space<vmem>>, vector<1x256xf32>
    %cst = arith.constant 5.000000e+00 : f32
    %1 = vector.broadcast %cst : f32 to vector<1x256xf32>
    %2 = arith.cmpf ole, %0, %1 : vector<1x256xf32>
    %3 = arith.extui %2 : vector<1x256xi1> to vector<1x256xi32>
    %4 = arith.sitofp %3 : vector<1x256xi32> to vector<1x256xf32>
    %5 = arith.mulf %0, %4 : vector<1x256xf32>
    %c0_1 = arith.constant 0 : index
    %c0_2 = arith.constant 0 : index
    %6 = vector.load %arg2[%c0_1, %c0_2] : memref<1x256xf32, #tpu.memory_space<vmem>>, vector<1x256xf32>
    tpu.vector_store %arg2[%c0_1, %c0_2], %5 {strides = array<i32>} : memref<1x256xf32, #tpu.memory_space<vmem>>, vector<1x256xf32>,
    return
  }
  func.func @transform_0(%arg0: i32) -> (i32, i32) {
    %c0_i32 = arith.constant 0 : i32
    %c0_i32_0 = arith.constant 0 : i32
    return %arg0, %c0_i32 : i32, i32
  }
  func.func @transform_1(%arg0: i32) -> (i32, i32) {
    %c0_i32 = arith.constant 0 : i32
    %c0_i32_0 = arith.constant 0 : i32
    return %arg0, %c0_i32 : i32, i32
  }
}

</mosaic_0001>

<llo_original>
// kernel: hard_cutoff.1
$region0: #{hard_cutoff.1}
  #allocation0 [shape = 'u32[]', space=smem, size = 0x4, offset = 0x4, fixed_abs, tag = 'smem constant byte address 0x4 - core index']
  #allocation1 [shape = 'u32[144,128]{1,0:T(1,128)}', space=vmem, size = 0x12000, scoped, tag = 'internal scratch']
  %s0 = inlined_call_operand.vmem [shape: f32[1,256], index: 0, kind: input, shape index: {}]
  %s1 = inlined_call_operand.vmem [shape: f32[1,256], index: 1, kind: output, shape index: {}]
  %s2 = sld [smem:[#allocation0]]
  $region14: #{hard_cutoff.1} parent=0
    _
  %s4 = ssub.s32 1, %s2
  %s5 = scalar_select 0, %s4, %s2
  // Predicated region
  $region2: #{hard_cutoff.1} parent=0 // pred_check
    _
  $region3: #{hard_cutoff.1} parent=0 // pred_check_branch
    %7 = sbr.rel (0) target = $region5
  $region4: #{hard_cutoff.1} parent=0 // pred_region
    _
  $region5: #{hard_cutoff.1} parent=0 // pred_fallthru
    _
  %v8 = vld [vmem:[%s0] sm:$0x3]
  %vm9 = vcmp.le.f32.partialorder %v8, 5.0
  %v10 = vsel %vm9, 1, 0
  %v11 = vcvt.s32.f32 %v10
  %v12 = vmul.f32 %v8, %v11
  %v13 = vlaneseq
  %vm14 = vcmp.ge.s32.totalorder %v13, 0
  %vm15 = vcmp.lt.s32.totalorder %v13, 256
  %vm16 = vmand %vm14, %vm15
  %17 = vst.msk [vmem:[%s1] sm:$0x3] %vm16, %v12
  // Predicated region
  $region6: #{hard_cutoff.1} parent=0 // pred_check
    _
  $region7: #{hard_cutoff.1} parent=0 // pred_check_branch
    %19 = sbr.rel (0) target = $region9
  $region8: #{hard_cutoff.1} parent=0 // pred_region
    _
  $region9: #{hard_cutoff.1} parent=0 // pred_fallthru
    _
  // Predicated region
  $region10: #{hard_cutoff.1} parent=0 // pred_check
    _
  $region11: #{hard_cutoff.1} parent=0 // pred_check_branch
    %21 = sbr.rel (0) target = $region13
  $region12: #{hard_cutoff.1} parent=0 // pred_region
    _
  $region13: #{hard_cutoff.1} parent=0 // pred_fallthru
    _

</llo_original>
